<compile_context>
chip_gen: v7x
topology: tpu7x:2x2x1
jax: 0.10.0
libtpu: 0.0.40
codegen_flags: <defaults>
</compile_context>

<pallas_src>
import functools
import math

import jax
import jax.numpy as jnp
from jax.experimental import pallas as pl
from jax.experimental.pallas import tpu as pltpu


def _mix_matmul_kernel(x1_ref, x2_ref, m1_ref, m2_ref, o_ref, *, compute_dtype):
    # x1_ref, x2_ref: (C, T_HW)  streaming activation tiles (HW on lanes)
    # m1_ref, m2_ref: (C, C)     per-batch fused effective weights (compute_dtype)
    # o_ref:          (C, T_HW)  lane-dense output tile
    x1 = x1_ref[...].astype(compute_dtype)
    x2 = x2_ref[...].astype(compute_dtype)
    acc = jnp.dot(m1_ref[...], x1, preferred_element_type=jnp.float32)
    acc = acc + jnp.dot(m2_ref[...], x2, preferred_element_type=jnp.float32)
    o_ref[...] = acc.astype(o_ref.dtype)


def _pick_hw_tile(hw):
    # Largest lane-friendly tile (multiple of 128) that divides HW; fall back to
    # the full extent (always a legal block size).
    for t in (2048, 1024, 512, 256, 128):
        if hw % t == 0:
            return t
    return hw


def mix_forward(fea1, fea2, params, *, compute_dtype=jnp.bfloat16):
    """fea1, fea2: (B, C, H, W). Returns (B, C, H, W) in fea1.dtype."""
    B, C, H, W = fea1.shape
    HW = H * W

    # Free reshapes: stay channel-major, HW contiguous on the last axis.
    f1 = fea1.reshape(B, C, HW)
    f2 = fea2.reshape(B, C, HW)

    w1 = params["w_conv1"].astype(jnp.float32)   # (2C, 2C)  conv1 weight
    w2 = params["w_conv2"].astype(jnp.float32)   # (C, 2C)   conv2 weight
    wA = params["w_ck1"].astype(jnp.float32)     # (C, 2C)   ck Linear1
    bA = params["b_ck1"].astype(jnp.float32)     # (C,)
    wB = params["w_ck2"].astype(jnp.float32)     # (2C, C)   ck Linear2
    bB = params["b_ck2"].astype(jnp.float32)     # (2C,)

    # ---- SE branch, hoisted, f32, tiny (operates on (B, 2C) vectors) --------
    # mean_{HW}(conv1(x)) == conv1(mean_{HW}(x))  because conv1 is 1x1/linear.
    mean_x = jnp.concatenate(
        [jnp.mean(f1.astype(jnp.float32), axis=2),
         jnp.mean(f2.astype(jnp.float32), axis=2)], axis=1)          # (B, 2C)
    pooled = mean_x @ w1.T                                           # (B, 2C)
    z1 = pooled @ wA.T + bA                                          # (B, C)
    z2 = z1 @ wB.T + bB                                              # (B, 2C)
    scale = jax.nn.sigmoid(z2)                                       # (B, 2C)

    # ---- Fuse gate + both 1x1 convs into one per-batch weight ---------------
    #   out[b] = w2 @ diag(scale[b]) @ w1 @ x[b]  ==  M_eff[b] @ x[b]
    m_eff = jnp.einsum("co,bo,oi->bci", w2, scale, w1)               # (B, C, 2C)
    m1 = m_eff[:, :, :C].astype(compute_dtype)                       # (B, C, C)
    m2 = m_eff[:, :, C:].astype(compute_dtype)                       # (B, C, C)

    t_hw = _pick_hw_tile(HW)
    nt = HW // t_hw

    kernel = functools.partial(_mix_matmul_kernel, compute_dtype=compute_dtype)

    out = pl.pallas_call(
        kernel,
        out_shape=jax.ShapeDtypeStruct((B, C, HW), fea1.dtype),
        grid_spec=pltpu.PrefetchScalarGridSpec(
            num_scalar_prefetch=0,
            grid=(B, nt),
            in_specs=[
                # streaming activations: leading batch dim squeezed out
                pl.BlockSpec((None, C, t_hw), lambda b, t: (b, 0, t)),
                pl.BlockSpec((None, C, t_hw), lambda b, t: (b, 0, t)),
                # per-batch fused weights: constant across the HW-tile axis
                # (block index unchanged across t -> not re-DMAed per step)
                pl.BlockSpec((None, C, C), lambda b, t: (b, 0, 0)),
                pl.BlockSpec((None, C, C), lambda b, t: (b, 0, 0)),
            ],
            out_specs=pl.BlockSpec((None, C, t_hw), lambda b, t: (b, 0, t)),
        ),
        compiler_params=pltpu.CompilerParams(
            dimension_semantics=("parallel", "parallel")),
    )(f1, f2, m1, m2)

    return out.reshape(B, C, H, W)


def make_params(inchannel, key):
    """Deterministic parameter init matching the shapes in Mix.__init__."""
    C = inchannel
    C2 = 2 * C
    ks = jax.random.split(key, 5)

    def uniform(k, shape, fan_in):
        bound = 1.0 / math.sqrt(fan_in)
        return jax.random.uniform(k, shape, jnp.float32, -bound, bound)

    return {
        # Conv2d(2C, 2C, 1, bias=False) -> weight (2C, 2C, 1, 1) squeezed
        "w_conv1": uniform(ks[0], (C2, C2), C2),
        # nn.Linear(2C, C)
        "w_ck1": uniform(ks[1], (C, C2), C2),
        "b_ck1": uniform(ks[2], (C,), C2),
        # nn.Linear(C, 2C)
        "w_ck2": uniform(ks[3], (C2, C), C),
        "b_ck2": uniform(ks[4], (C2,), C),
        # Conv2d(2C, C, 1, bias=False)
        "w_conv2": uniform(jax.random.fold_in(key, 99), (C, C2), C2),
    }


def _reference(fea1, fea2, params):
    # pure-JAX reference (mirrors the PyTorch module exactly)
    x = jnp.concatenate([fea1, fea2], axis=1)                    # (B, 2C, H, W)
    y1 = jnp.einsum("oi,bihw->bohw", params["w_conv1"], x)
    pooled = jnp.mean(y1, axis=(2, 3))                           # (B, 2C)
    z1 = pooled @ params["w_ck1"].T + params["b_ck1"]            # (B, C)
    z2 = z1 @ params["w_ck2"].T + params["b_ck2"]                # (B, 2C)
    scale = jax.nn.sigmoid(z2)[:, :, None, None]
    gated = y1 * scale
    return jnp.einsum("oi,bihw->bohw", params["w_conv2"], gated)


if __name__ == "__main__":
    key = jax.random.PRNGKey(0)
    k1, k2, kp = jax.random.split(key, 3)

    inchannel = 4      # small test size; module default is 64
    B, H, W = 2, 16, 16
    fea1 = jax.random.normal(k1, (B, inchannel, H, W), jnp.float32)
    fea2 = jax.random.normal(k2, (B, inchannel, H, W), jnp.float32)

    params = make_params(inchannel, kp)
    ref = _reference(fea1, fea2, params)

    # f32 compute path: fusion is mathematically exact (fp-reassociation only)
    out_f32 = jax.block_until_ready(
        mix_forward(fea1, fea2, params, compute_dtype=jnp.float32))
    assert out_f32.shape == (B, inchannel, H, W)
    assert jnp.allclose(out_f32, ref, atol=1e-4, rtol=1e-4)

    # default bf16 MXU path: relaxed tolerance for bf16 rounding
    out_bf16 = jax.block_until_ready(mix_forward(fea1, fea2, params))
    assert out_bf16.shape == (B, inchannel, H, W)
    assert jnp.allclose(out_bf16, ref, atol=5e-2, rtol=5e-2)

    print("KERNEL_OK")
</pallas_src>

<mosaic_0001>
module attributes {stable_mosaic.version = 11 : i64} {
  func.func @_mix_matmul_kernel(%arg0: i32, %arg1: i32, %arg2: memref<1x4x256xf32, #tpu.memory_space<vmem>>, %arg3: memref<1x4x256xf32, #tpu.memory_space<vmem>>, %arg4: memref<1x4x4xf32, #tpu.memory_space<vmem>>, %arg5: memref<1x4x4xf32, #tpu.memory_space<vmem>>, %arg6: memref<1x4x256xf32, #tpu.memory_space<vmem>>) attributes {dimension_semantics = [#tpu.dimension_semantics<parallel>, #tpu.dimension_semantics<parallel>], iteration_bounds = array<i64: 2, 1>, scalar_prefetch = 0 : i64, scratch_operands = 0 : i64, tpu.core_type = #tpu.core_type<tc>, window_params = [{transform_indices = @transform_0, window_bounds = array<i64: 1, 4, 256>}, {transform_indices = @transform_1, window_bounds = array<i64: 1, 4, 256>}, {transform_indices = @transform_2, window_bounds = array<i64: 1, 4, 4>}, {transform_indices = @transform_3, window_bounds = array<i64: 1, 4, 4>}, {transform_indices = @transform_4, window_bounds = array<i64: 1, 4, 256>}]} {
    %c0 = arith.constant 0 : index
    %c0_0 = arith.constant 0 : index
    %c0_1 = arith.constant 0 : index
    %0 = vector.load %arg2[%c0, %c0_0, %c0_1] : memref<1x4x256xf32, #tpu.memory_space<vmem>>, vector<1x4x256xf32>
    %1 = vector.shape_cast %0 : vector<1x4x256xf32> to vector<4x256xf32>
    %c0_2 = arith.constant 0 : index
    %c0_3 = arith.constant 0 : index
    %c0_4 = arith.constant 0 : index
    %2 = vector.load %arg3[%c0_2, %c0_3, %c0_4] : memref<1x4x256xf32, #tpu.memory_space<vmem>>, vector<1x4x256xf32>
    %3 = vector.shape_cast %2 : vector<1x4x256xf32> to vector<4x256xf32>
    %c0_5 = arith.constant 0 : index
    %c0_6 = arith.constant 0 : index
    %c0_7 = arith.constant 0 : index
    %4 = vector.load %arg4[%c0_5, %c0_6, %c0_7] : memref<1x4x4xf32, #tpu.memory_space<vmem>>, vector<1x4x4xf32>
    %5 = vector.shape_cast %4 : vector<1x4x4xf32> to vector<4x4xf32>
    %cst = arith.constant dense<0.000000e+00> : vector<4x256xf32>
    %6 = tpu.matmul %5, %1, %cst {dimension_numbers = #tpu.dot_dimension_numbers<[1], [0], [0], [1], [0, 0, 1, 1], [], []>} : vector<4x4xf32>, vector<4x256xf32>, vector<4x256xf32> -> vector<4x256xf32>
    %c0_8 = arith.constant 0 : index
    %c0_9 = arith.constant 0 : index
    %c0_10 = arith.constant 0 : index
    %7 = vector.load %arg5[%c0_8, %c0_9, %c0_10] : memref<1x4x4xf32, #tpu.memory_space<vmem>>, vector<1x4x4xf32>
    %8 = vector.shape_cast %7 : vector<1x4x4xf32> to vector<4x4xf32>
    %cst_11 = arith.constant dense<0.000000e+00> : vector<4x256xf32>
    %9 = tpu.matmul %8, %3, %cst_11 {dimension_numbers = #tpu.dot_dimension_numbers<[1], [0], [0], [1], [0, 0, 1, 1], [], []>} : vector<4x4xf32>, vector<4x256xf32>, vector<4x256xf32> -> vector<4x256xf32>
    %10 = arith.addf %6, %9 : vector<4x256xf32>
    %c0_12 = arith.constant 0 : index
    %c0_13 = arith.constant 0 : index
    %c0_14 = arith.constant 0 : index
    %11 = vector.load %arg6[%c0_12, %c0_13, %c0_14] : memref<1x4x256xf32, #tpu.memory_space<vmem>>, vector<1x4x256xf32>
    %12 = vector.shape_cast %11 : vector<1x4x256xf32> to vector<4x256xf32>
    %13 = vector.shape_cast %10 : vector<4x256xf32> to vector<1x4x256xf32>
    tpu.vector_store %arg6[%c0_12, %c0_13, %c0_14], %13 {strides = array<i32>} : memref<1x4x256xf32, #tpu.memory_space<vmem>>, vector<1x4x256xf32>,
    return
  }
  func.func @transform_0(%arg0: i32, %arg1: i32) -> (i32, i32, i32) {
    %c0_i32 = arith.constant 0 : i32
    %c0_i32_0 = arith.constant 0 : i32
    return %arg0, %c0_i32, %arg1 : i32, i32, i32
  }
  func.func @transform_1(%arg0: i32, %arg1: i32) -> (i32, i32, i32) {
    %c0_i32 = arith.constant 0 : i32
    %c0_i32_0 = arith.constant 0 : i32
    return %arg0, %c0_i32, %arg1 : i32, i32, i32
  }
  func.func @transform_2(%arg0: i32, %arg1: i32) -> (i32, i32, i32) {
    %c0_i32 = arith.constant 0 : i32
    %c0_i32_0 = arith.constant 0 : i32
    %c0_i32_1 = arith.constant 0 : i32
    return %arg0, %c0_i32, %c0_i32_0 : i32, i32, i32
  }
  func.func @transform_3(%arg0: i32, %arg1: i32) -> (i32, i32, i32) {
    %c0_i32 = arith.constant 0 : i32
    %c0_i32_0 = arith.constant 0 : i32
    %c0_i32_1 = arith.constant 0 : i32
    return %arg0, %c0_i32, %c0_i32_0 : i32, i32, i32
  }
  func.func @transform_4(%arg0: i32, %arg1: i32) -> (i32, i32, i32) {
    %c0_i32 = arith.constant 0 : i32
    %c0_i32_0 = arith.constant 0 : i32
    return %arg0, %c0_i32, %arg1 : i32, i32, i32
  }
}

</mosaic_0001>

<llo_original>
// kernel: tpu_custom_call.1
$region0: #{tpu_custom_call.1}
  #allocation0 [shape = 'u32[]', space=smem, size = 0x4, offset = 0x4, fixed_abs, tag = 'smem constant byte address 0x4 - core index']
  #allocation1 [shape = 'u32[144,128]{1,0:T(1,128)}', space=vmem, size = 0x12000, scoped, tag = 'internal scratch']
  %s0 = inlined_call_operand.hbm [shape: f32[2,4,256], index: 0, kind: input, shape index: {}]
  %s1 = inlined_call_operand.hbm [shape: f32[2,4,256], index: 1, kind: input, shape index: {}]
  %s2 = inlined_call_operand.hbm [shape: f32[2,4,4], index: 2, kind: input, shape index: {}]
  %s3 = inlined_call_operand.vmem [shape: f32[2,4,4], index: 3, kind: input, shape index: {}]
  %s4 = inlined_call_operand.hbm [shape: f32[2,4,256], index: 4, kind: output, shape index: {}]
  %s5 = sld [smem:[#allocation0]]
  $region61: #{tpu_custom_call.1} parent=0
    _
  %s7 = ssub.s32 1, %s5
  %s8 = scalar_select 0, %s7, %s5
  $region1: #{tpu_custom_call.1} parent=0
    #allocation2 [shape = 'u8[8192]{0}', space=vmem, size = 0x2000, scoped, tag = 'input window, operand 0']
    #allocation3 [shape = 's32[2]{0}', space=sflag, size = 0x8, scoped, tag = 'scoped memory for tpu_custom_call.1']
    #allocation4 [shape = 's32[2]{0}', space=sflag, size = 0x8, scoped, tag = 'scoped memory for tpu_custom_call.1']
    #allocation5 [shape = 'u8[8192]{0}', space=vmem, size = 0x2000, scoped, tag = 'input window, operand 1']
    #allocation6 [shape = 's32[2]{0}', space=sflag, size = 0x8, scoped, tag = 'scoped memory for tpu_custom_call.1']
    #allocation7 [shape = 'u8[4096]{0}', space=vmem, size = 0x1000, scoped, tag = 'input window, operand 2']
    #allocation8 [shape = 'u8[8192]{0}', space=vmem, size = 0x2000, scoped, tag = 'output window, operand 0']
    %9 = vsyncpa [#allocation3], 0
    %s10 = scalar_lea.sflag [#allocation3], 1
    %11 = vsyncpa %s10, 0
    %12 = vsyncpa [#allocation6], 0
    %s13 = scalar_lea.sflag [#allocation6], 1
    %14 = vsyncpa %s13, 0
    %15 = vsyncpa [#allocation4], 0
    %s16 = scalar_lea.sflag [#allocation4], 1
    %17 = vsyncpa %s16, 0
    loop: start=0, step=1, limit=4
    $region2: #{tpu_custom_call.1} parent=1 // loop_pre_header
      _
    $region3: #{tpu_custom_call.1} parent=1 // loop_header
      %s19 = sphi 0, %s23
      %p20 = scmp.ge.s32.totalorder %s19, 4
      %s26 = sphi 0, %s38
      %s27 = sphi 0, %s34
      %s28 = sphi 0, %s26
      %s29 = sphi 0, %s27
      %s30 = sphi 0, %s28
      %s31 = sphi 0, %s29
      %s43 = sphi 0, %s45
      %s46 = sphi 0, %s43
      %s47 = sphi 0, %s46
      %s63 = sphi 0, %s47
      %s71 = sphi 0, %s73
      %s74 = sphi 0, %s71
      %s75 = sphi 0, %s74
      %s91 = sphi 0, %s75
      %s97 = sphi 0, %s99
      %s100 = sphi 0, %s97
      %s101 = sphi 0, %s100
      %s117 = sphi 0, %s101
      %s123 = sphi 0, %s125
      %s126 = sphi 0, %s123
      %s127 = sphi 0, %s126
      %s143 = sphi 0, %s127
      %s151 = sphi 0, %s153
      %s154 = sphi 0, %s151
      %s155 = sphi 0, %s154
      %s171 = sphi 0, %s155
    $region4: #{tpu_custom_call.1} parent=1 // loop_header_branch
      %22 = sbr.rel (%p20) target = $region8
    $region5: #{tpu_custom_call.1} parent=1 // loop_body
      %s24 = ssub.s32 %s19, 1
      %s25 = ssub.s32 %s19, 2
      %s32 = sadd.s32 1, %s27
      %p33 = scmp.ge.s32.totalorder %s32, 1
      %s34 = scalar_select %p33, 0, %s32
      %s35 = sadd.s32 1, %s26
      %s36 = scalar_select %p33, %s35, %s26
      %p37 = scmp.ge.s32.totalorder %s36, 2
      %s38 = scalar_select %p37, 0, %s36
      %s39 = ssub.s32 %s26, %s38
      %s40 = ssub.s32 %s27, %s34
      %s41 = sor.u32 %s39, %s40
      %p42 = scmp.eq.s32.totalorder %s41, 0
      %s44 = sadd.s32 %s43, 1
      %s45 = scalar_select %p42, %s43, %s44
      %p48 = pneg %p42
      %p49 = scmp.eq.s32.totalorder %s19, 1
      %p50 = por %p48, %p49
      %p51 = scmp.ne.s32.totalorder %s43, %s46
      %p52 = scmp.eq.s32.totalorder %s19, 0
      %p53 = por %p51, %p52
      %p54 = scmp.ne.s32.totalorder %s43, %s46
      %p55 = scmp.eq.s32.totalorder %s24, 1
      %p56 = por %p54, %p55
      %p57 = scmp.ne.s32.totalorder %s46, %s47
      %p58 = scmp.eq.s32.totalorder %s24, 0
      %p59 = por %p57, %p58
      %p60 = scmp.ne.s32.totalorder %s46, %s47
      %p61 = scmp.eq.s32.totalorder %s25, 1
      %p62 = por %p60, %p61
      %p64 = scmp.ne.s32.totalorder %s47, %s63
      %p65 = scmp.eq.s32.totalorder %s25, 0
      %p66 = por %p64, %p65
      %s67 = ssub.s32 %s26, %s38
      %s68 = ssub.s32 %s27, %s34
      %s69 = sor.u32 %s67, %s68
      %p70 = scmp.eq.s32.totalorder %s69, 0
      %s72 = sadd.s32 %s71, 1
      %s73 = scalar_select %p70, %s71, %s72
      %p76 = pneg %p70
      %p77 = scmp.eq.s32.totalorder %s19, 1
      %p78 = por %p76, %p77
      %p79 = scmp.ne.s32.totalorder %s71, %s74
      %p80 = scmp.eq.s32.totalorder %s19, 0
      %p81 = por %p79, %p80
      %p82 = scmp.ne.s32.totalorder %s71, %s74
      %p83 = scmp.eq.s32.totalorder %s24, 1
      %p84 = por %p82, %p83
      %p85 = scmp.ne.s32.totalorder %s74, %s75
      %p86 = scmp.eq.s32.totalorder %s24, 0
      %p87 = por %p85, %p86
      %p88 = scmp.ne.s32.totalorder %s74, %s75
      %p89 = scmp.eq.s32.totalorder %s25, 1
      %p90 = por %p88, %p89
      %p92 = scmp.ne.s32.totalorder %s75, %s91
      %p93 = scmp.eq.s32.totalorder %s25, 0
      %p94 = por %p92, %p93
      %s95 = ssub.s32 %s26, %s38
      %p96 = scmp.eq.s32.totalorder %s95, 0
      %s98 = sadd.s32 %s97, 1
      %s99 = scalar_select %p96, %s97, %s98
      %p102 = pneg %p96
      %p103 = scmp.eq.s32.totalorder %s19, 1
      %p104 = por %p102, %p103
      %p105 = scmp.ne.s32.totalorder %s97, %s100
      %p106 = scmp.eq.s32.totalorder %s19, 0
      %p107 = por %p105, %p106
      %p108 = scmp.ne.s32.totalorder %s97, %s100
      %p109 = scmp.eq.s32.totalorder %s24, 1
      %p110 = por %p108, %p109
      %p111 = scmp.ne.s32.totalorder %s100, %s101
      %p112 = scmp.eq.s32.totalorder %s24, 0
      %p113 = por %p111, %p112
      %p114 = scmp.ne.s32.totalorder %s100, %s101
      %p115 = scmp.eq.s32.totalorder %s25, 1
      %p116 = por %p114, %p115
      %p118 = scmp.ne.s32.totalorder %s101, %s117
      %p119 = scmp.eq.s32.totalorder %s25, 0
      %p120 = por %p118, %p119
      %s121 = ssub.s32 %s26, %s38
      %p122 = scmp.eq.s32.totalorder %s121, 0
      %s124 = sadd.s32 %s123, 1
      %s125 = scalar_select %p122, %s123, %s124
      %p128 = pneg %p122
      %p129 = scmp.eq.s32.totalorder %s19, 1
      %p130 = por %p128, %p129
      %p131 = scmp.ne.s32.totalorder %s123, %s126
      %p132 = scmp.eq.s32.totalorder %s19, 0
      %p133 = por %p131, %p132
      %p134 = scmp.ne.s32.totalorder %s123, %s126
      %p135 = scmp.eq.s32.totalorder %s24, 1
      %p136 = por %p134, %p135
      %p137 = scmp.ne.s32.totalorder %s126, %s127
      %p138 = scmp.eq.s32.totalorder %s24, 0
      %p139 = por %p137, %p138
      %p140 = scmp.ne.s32.totalorder %s126, %s127
      %p141 = scmp.eq.s32.totalorder %s25, 1
      %p142 = por %p140, %p141
      %p144 = scmp.ne.s32.totalorder %s127, %s143
      %p145 = scmp.eq.s32.totalorder %s25, 0
      %p146 = por %p144, %p145
      %s147 = ssub.s32 %s26, %s38
      %s148 = ssub.s32 %s27, %s34
      %s149 = sor.u32 %s147, %s148
      %p150 = scmp.eq.s32.totalorder %s149, 0
      %s152 = sadd.s32 %s151, 1
      %s153 = scalar_select %p150, %s151, %s152
      %p156 = pneg %p150
      %p157 = scmp.eq.s32.totalorder %s19, 1
      %p158 = por %p156, %p157
      %p159 = scmp.ne.s32.totalorder %s151, %s154
      %p160 = scmp.eq.s32.totalorder %s19, 0
      %p161 = por %p159, %p160
      %p162 = scmp.ne.s32.totalorder %s151, %s154
      %p163 = scmp.eq.s32.totalorder %s24, 1
      %p164 = por %p162, %p163
      %p165 = scmp.ne.s32.totalorder %s154, %s155
      %p166 = scmp.eq.s32.totalorder %s24, 0
      %p167 = por %p165, %p166
      %p168 = scmp.ne.s32.totalorder %s154, %s155
      %p169 = scmp.eq.s32.totalorder %s25, 1
      %p170 = por %p168, %p169
      %p172 = scmp.ne.s32.totalorder %s155, %s171
      %p173 = scmp.eq.s32.totalorder %s25, 0
      %p174 = por %p172, %p173
      %p175 = scmp.le.s32.totalorder 1, %s19
      %p176 = scmp.lt.s32.totalorder %s19, 3
      %p177 = pnand %p175, %p176
      %p178 = pneg %p177
      // Predicated region
      $region9: #{tpu_custom_call.1} parent=5 // pred_check
        _
      $region10: #{tpu_custom_call.1} parent=5 // pred_check_branch
        %180 = sbr.rel (%p177) target = $region12
      $region11: #{tpu_custom_call.1} parent=5 // pred_region
        %s181 = ssub.s32 %s19, 1
      $region12: #{tpu_custom_call.1} parent=5 // pred_fallthru
        _
      %p182 = scmp.lt.s32.totalorder %s19, 2
      // Predicated region
      $region13: #{tpu_custom_call.1} parent=5 // pred_check
        %p183 = pneg %p182
      $region14: #{tpu_custom_call.1} parent=5 // pred_check_branch
        %185 = sbr.rel (%p183) target = $region16
      $region15: #{tpu_custom_call.1} parent=5 // pred_region
        // Predicated region
        $region17: #{tpu_custom_call.1} parent=15 // pred_check
          %p186 = pneg %p53
        $region18: #{tpu_custom_call.1} parent=15 // pred_check_branch
          %188 = sbr.rel (%p186) target = $region20
        $region19: #{tpu_custom_call.1} parent=15 // pred_region
          %s189 = sand.u32 %s43, 1
          %s190 = scalar_lea.sflag [#allocation3], %s189
          %s191 = sand.u32 %s43, 1
          %s192 = smul.addr %s191, 8
          %s193 = scalar_lea.vmem [#allocation2], %s192
          %s194 = smul.u32 2, %s27
          %s196 = ssub.s32 128, 128
          %197 = vsyncadd %s190, %s196
          %s198 = smul.addr %s26, 2
          %s199 = sadd.s32 %s194, %s198
          %s200 = smul.addr %s199, 64
          %s201 = scalar_lea.hbm %s0, %s200
          %s203 = sshll.u32 %s193, 4
          %s204 = int_to_ptr.vmem [resolvable:$true] %s203
          %206 = dma.hbm_to_vmem [thread:$0]  %s201, 128, %s204, %s190
        $region20: #{tpu_custom_call.1} parent=15 // pred_fallthru
          _
        // Predicated region
        $region21: #{tpu_custom_call.1} parent=15 // pred_check
          %p207 = pneg %p81
        $region22: #{tpu_custom_call.1} parent=15 // pred_check_branch
          %209 = sbr.rel (%p207) target = $region24
        $region23: #{tpu_custom_call.1} parent=15 // pred_region
          %s210 = sand.u32 %s19, 1
          %s211 = scalar_lea.sflag [#allocation6], %s210
          %s212 = sand.u32 %s71, 1
          %s213 = smul.addr %s212, 8
          %s214 = scalar_lea.vmem [#allocation5], %s213
          %s215 = smul.u32 2, %s27
          %s217 = ssub.s32 128, 128
          %218 = vsyncadd %s211, %s217
          %s219 = smul.addr %s26, 2
          %s220 = sadd.s32 %s215, %s219
          %s221 = smul.addr %s220, 64
          %s222 = scalar_lea.hbm %s1, %s221
          %s224 = sshll.u32 %s214, 4
          %s225 = int_to_ptr.vmem [resolvable:$true] %s224
          %227 = dma.hbm_to_vmem [thread:$0]  %s222, 128, %s225, %s211
        $region24: #{tpu_custom_call.1} parent=15 // pred_fallthru
          _
        // Predicated region
        $region25: #{tpu_custom_call.1} parent=15 // pred_check
          %p228 = pneg %p107
        $region26: #{tpu_custom_call.1} parent=15 // pred_check_branch
          %230 = sbr.rel (%p228) target = $region28
        $region27: #{tpu_custom_call.1} parent=15 // pred_region
          %s231 = sand.u32 %s19, 1
          %s232 = scalar_lea.sflag [#allocation6], %s231
          %s233 = sand.u32 %s97, 1
          %s234 = smul.addr %s233, 4
          %s235 = scalar_lea.vmem [#allocation7], %s234
          %s237 = ssub.s32 64, 64
          %238 = vsyncadd %s232, %s237
          %s239 = smul.addr %s26, 64
          %s240 = scalar_lea.hbm %s2, %s239
          %s242 = sshll.u32 %s235, 4
          %s243 = int_to_ptr.vmem [resolvable:$true] %s242
          %245 = dma.hbm_to_vmem [thread:$0]  %s240, 64, %s243, %s232
        $region28: #{tpu_custom_call.1} parent=15 // pred_fallthru
          _
        // Predicated region
        $region29: #{tpu_custom_call.1} parent=15 // pred_check
          %p246 = pneg %p133
        $region30: #{tpu_custom_call.1} parent=15 // pred_check_branch
          %248 = sbr.rel (%p246) target = $region32
        $region31: #{tpu_custom_call.1} parent=15 // pred_region
          %p249 = scmp.lt.s32.totalorder %s26, 1
          %s250 = scalar_select %p249, %s26, 1
          %s251 = smul.addr %s250, 4
          %s252 = scalar_lea.vmem %s3, %s251
        $region32: #{tpu_custom_call.1} parent=15 // pred_fallthru
          _
      $region16: #{tpu_custom_call.1} parent=5 // pred_fallthru
        _
      %p253 = scmp.le.s32.totalorder 1, %s19
      %p254 = scmp.lt.s32.totalorder %s19, 3
      %p255 = pnand %p253, %p254
      %p256 = pneg %p255
      // Predicated region
      $region33: #{tpu_custom_call.1} parent=5 // pred_check
        _
      $region34: #{tpu_custom_call.1} parent=5 // pred_check_branch
        %258 = sbr.rel (%p255) target = $region36
      $region35: #{tpu_custom_call.1} parent=5 // pred_region
        %s259 = ssub.s32 %s19, 1
        %s260 = sand.u32 %s46, 1
        %s261 = scalar_lea.sflag [#allocation3], %s260
        %s262 = sand.u32 %s46, 1
        %s263 = smul.addr %s262, 8
        %s264 = scalar_lea.vmem [#allocation2], %s263
        // Predicated region
        $region37: #{tpu_custom_call.1} parent=35 // pred_check
          %p265 = pneg %p59
        $region38: #{tpu_custom_call.1} parent=35 // pred_check_branch
          %267 = sbr.rel (%p265) target = $region40
        $region39: #{tpu_custom_call.1} parent=35 // pred_region
          %268 = dma.done %s261, 128
        $region40: #{tpu_custom_call.1} parent=35 // pred_fallthru
          _
        %s269 = sand.u32 %s24, 1
        %s270 = scalar_lea.sflag [#allocation6], %s269
        %s271 = sand.u32 %s74, 1
        %s272 = smul.addr %s271, 8
        %s273 = scalar_lea.vmem [#allocation5], %s272
        // Predicated region
        $region41: #{tpu_custom_call.1} parent=35 // pred_check
          %p274 = pneg %p87
        $region42: #{tpu_custom_call.1} parent=35 // pred_check_branch
          %276 = sbr.rel (%p274) target = $region44
        $region43: #{tpu_custom_call.1} parent=35 // pred_region
          %277 = dma.done %s270, 128
        $region44: #{tpu_custom_call.1} parent=35 // pred_fallthru
          _
        %s278 = sand.u32 %s24, 1
        %s279 = scalar_lea.sflag [#allocation6], %s278
        %s280 = sand.u32 %s100, 1
        %s281 = smul.addr %s280, 4
        %s282 = scalar_lea.vmem [#allocation7], %s281
        // Predicated region
        $region45: #{tpu_custom_call.1} parent=35 // pred_check
          %p283 = pneg %p113
        $region46: #{tpu_custom_call.1} parent=35 // pred_check_branch
          %285 = sbr.rel (%p283) target = $region48
        $region47: #{tpu_custom_call.1} parent=35 // pred_region
          %286 = dma.done %s279, 64
        $region48: #{tpu_custom_call.1} parent=35 // pred_fallthru
          _
        %s287 = sand.u32 %s46, 1
        %s288 = scalar_lea.sflag [#allocation3], %s287
        %s289 = sand.u32 %s46, 1
        %s290 = smul.addr %s289, 8
        %s291 = scalar_lea.vmem [#allocation2], %s290
        %p292 = pneg %p59
        %p293 = pneg %p56
        %s294 = sand.u32 %s24, 1
        %s295 = scalar_lea.sflag [#allocation6], %s294
        %s296 = sand.u32 %s74, 1
        %s297 = smul.addr %s296, 8
        %s298 = scalar_lea.vmem [#allocation5], %s297
        %p299 = pneg %p87
        %p300 = pneg %p84
        %s301 = sand.u32 %s24, 1
        %s302 = scalar_lea.sflag [#allocation6], %s301
        %s303 = sand.u32 %s100, 1
        %s304 = smul.addr %s303, 4
        %s305 = scalar_lea.vmem [#allocation7], %s304
        %p306 = pneg %p113
        %p307 = pneg %p110
        %p308 = scmp.lt.s32.totalorder %s28, 1
        %s309 = scalar_select %p308, %s28, 1
        %s310 = smul.addr %s309, 4
        %s311 = scalar_lea.vmem %s3, %s310
        %p312 = pneg %p139
        %p313 = pneg %p136
        %p314 = pneg %p167
        %p315 = pneg %p164
        %s316 = sand.u32 %s154, 1
        %s317 = scalar_lea.sflag [#allocation4], %s316
        %s318 = sand.u32 %s154, 1
        %s319 = smul.addr %s318, 8
        %s320 = scalar_lea.vmem [#allocation8], %s319
        %s321 = smul.u32 2, %s29
        %s322 = smul.u32 2, %s29
        %p323 = scmp.lt.s32.totalorder %s28, 1
        %s324 = scalar_select %p323, %s28, 1
        %s325 = smul.addr %s324, 4
        %s326 = scalar_lea.vmem %s3, %s325
        %s327 = smul.u32 2, %s29
        %v328 = vld [vmem:[%s264] sm:$0xff]
        %v329 = vld [vmem:[%s273] sm:$0xff]
        %v330 = vld [vmem:[%s282] sm:$0xf]
        %v331 = vld [vmem:[%s326] sm:$0xf]
        %v333 = vcombine.high %v329, %v329
        %vm334 = vcmask 31744
        %v336 = vsel %vm334, %v331, 0
        %vm338 = vcmask 1043456
        %v339 = vsel %vm338, %v329, 0
        %v341 = vsel %vm338, %v333, 0
        %343 = vmatprep.subr.mxu0 %v341
        %344 = vmatpush1.msra.mxu0 %v339
        %345 = vmatprep.subr.mxu0 0.0
        %346 = vmatpush1.msra.mxu0 0.0
        %347 = vmatprep.subr.mxu0 0.0
        %348 = vmatpush1.msra.mxu0 0.0
        %349 = vmatprep.subr.mxu0 0.0
        %350 = vmatpush1.msra.mxu0 0.0
        %351 = vmatprep.subr.mxu0 0.0
        %352 = vmatpush1.msra.mxu0 0.0
        %353 = vmatprep.subr.mxu0 0.0
        %354 = vmatpush1.msra.mxu0 0.0
        %355 = vmatprep.subr.mxu0 0.0
        %356 = vmatpush1.msra.mxu0 0.0
        %357 = vmatprep.subr.mxu0 0.0
        %358 = vmatpush1.msra.mxu0 0.0
        %359 = vmatprep.subr.mxu0 0.0
        %360 = vmatpush1.msra.mxu0 0.0
        %361 = vmatprep.subr.mxu0 0.0
        %362 = vmatpush1.msra.mxu0 0.0
        %363 = vmatprep.subr.mxu0 0.0
        %364 = vmatpush1.msra.mxu0 0.0
        %365 = vmatprep.subr.mxu0 0.0
        %366 = vmatpush1.msra.mxu0 0.0
        %367 = vmatprep.subr.mxu0 0.0
        %368 = vmatpush1.msra.mxu0 0.0
        %369 = vmatprep.subr.mxu0 0.0
        %370 = vmatpush1.msra.mxu0 0.0
        %371 = vmatprep.subr.mxu0 0.0
        %372 = vmatpush1.msra.mxu0 0.0
        %373 = vmatprep.subr.mxu0 0.0
        %374 = vmatpush1.msra.mxu0 0.0
        %375 = vmatprep.subr.mxu0 0.0
        %376 = vmatpush1.msra.mxu0 0.0
        %377 = vmatprep.subr.mxu0 0.0
        %378 = vmatpush1.msra.mxu0 0.0
        %379 = vmatprep.subr.mxu0 0.0
        %380 = vmatpush1.msra.mxu0 0.0
        %381 = vmatprep.subr.mxu0 0.0
        %382 = vmatpush1.msra.mxu0 0.0
        %383 = vmatprep.subr.mxu0 0.0
        %384 = vmatpush1.msra.mxu0 0.0
        %385 = vmatprep.subr.mxu0 0.0
        %386 = vmatpush1.msra.mxu0 0.0
        %387 = vmatprep.subr.mxu0 0.0
        %388 = vmatpush1.msra.mxu0 0.0
        %389 = vmatprep.subr.mxu0 0.0
        %390 = vmatpush1.msra.mxu0 0.0
        %391 = vmatprep.subr.mxu0 0.0
        %392 = vmatpush1.msra.mxu0 0.0
        %393 = vmatprep.subr.mxu0 0.0
        %394 = vmatpush1.msra.mxu0 0.0
        %395 = vmatprep.subr.mxu0 0.0
        %396 = vmatpush1.msra.mxu0 0.0
        %397 = vmatprep.subr.mxu0 0.0
        %398 = vmatpush1.msra.mxu0 0.0
        %399 = vmatprep.subr.mxu0 0.0
        %400 = vmatpush1.msra.mxu0 0.0
        %401 = vmatprep.subr.mxu0 0.0
        %402 = vmatpush1.msra.mxu0 0.0
        %403 = vmatprep.subr.mxu0 0.0
        %404 = vmatpush1.msra.mxu0 0.0
        %405 = vmatprep.subr.mxu0 0.0
        %406 = vmatpush1.msra.mxu0 0.0
        %407 = vmatprep.mubr.f32.mxu0 0.0
        %408 = vmatmul.mubr.f32.gmra.mrb[0].mxu0 %v336
        %v409 = vpop.f32.mrb[0].mxu0
        %v410 = vadd.f32 0.0, %v409
        %v411 = vpop.f32.mrb[0].mxu0
        %v412 = vadd.f32 0.0, %v411
        %413 = vdwg.mxu0
        %v415 = vcombine.high %v328, %v328
        %v417 = vsel %vm334, %v330, 0
        %v419 = vsel %vm338, %v328, 0
        %v421 = vsel %vm338, %v415, 0
        %423 = vmatprep.subr.mxu0 %v421
        %424 = vmatpush1.msra.mxu0 %v419
        %425 = vmatprep.subr.mxu0 0.0
        %426 = vmatpush1.msra.mxu0 0.0
        %427 = vmatprep.subr.mxu0 0.0
        %428 = vmatpush1.msra.mxu0 0.0
        %429 = vmatprep.subr.mxu0 0.0
        %430 = vmatpush1.msra.mxu0 0.0
        %431 = vmatprep.subr.mxu0 0.0
        %432 = vmatpush1.msra.mxu0 0.0
        %433 = vmatprep.subr.mxu0 0.0
        %434 = vmatpush1.msra.mxu0 0.0
        %435 = vmatprep.subr.mxu0 0.0
        %436 = vmatpush1.msra.mxu0 0.0
        %437 = vmatprep.subr.mxu0 0.0
        %438 = vmatpush1.msra.mxu0 0.0
        %439 = vmatprep.subr.mxu0 0.0
        %440 = vmatpush1.msra.mxu0 0.0
        %441 = vmatprep.subr.mxu0 0.0
        %442 = vmatpush1.msra.mxu0 0.0
        %443 = vmatprep.subr.mxu0 0.0
        %444 = vmatpush1.msra.mxu0 0.0
        %445 = vmatprep.subr.mxu0 0.0
        %446 = vmatpush1.msra.mxu0 0.0
        %447 = vmatprep.subr.mxu0 0.0
        %448 = vmatpush1.msra.mxu0 0.0
        %449 = vmatprep.subr.mxu0 0.0
        %450 = vmatpush1.msra.mxu0 0.0
        %451 = vmatprep.subr.mxu0 0.0
        %452 = vmatpush1.msra.mxu0 0.0
        %453 = vmatprep.subr.mxu0 0.0
        %454 = vmatpush1.msra.mxu0 0.0
        %455 = vmatprep.subr.mxu0 0.0
        %456 = vmatpush1.msra.mxu0 0.0
        %457 = vmatprep.subr.mxu0 0.0
        %458 = vmatpush1.msra.mxu0 0.0
        %459 = vmatprep.subr.mxu0 0.0
        %460 = vmatpush1.msra.mxu0 0.0
        %461 = vmatprep.subr.mxu0 0.0
        %462 = vmatpush1.msra.mxu0 0.0
        %463 = vmatprep.subr.mxu0 0.0
        %464 = vmatpush1.msra.mxu0 0.0
        %465 = vmatprep.subr.mxu0 0.0
        %466 = vmatpush1.msra.mxu0 0.0
        %467 = vmatprep.subr.mxu0 0.0
        %468 = vmatpush1.msra.mxu0 0.0
        %469 = vmatprep.subr.mxu0 0.0
        %470 = vmatpush1.msra.mxu0 0.0
        %471 = vmatprep.subr.mxu0 0.0
        %472 = vmatpush1.msra.mxu0 0.0
        %473 = vmatprep.subr.mxu0 0.0
        %474 = vmatpush1.msra.mxu0 0.0
        %475 = vmatprep.subr.mxu0 0.0
        %476 = vmatpush1.msra.mxu0 0.0
        %477 = vmatprep.subr.mxu0 0.0
        %478 = vmatpush1.msra.mxu0 0.0
        %479 = vmatprep.subr.mxu0 0.0
        %480 = vmatpush1.msra.mxu0 0.0
        %481 = vmatprep.subr.mxu0 0.0
        %482 = vmatpush1.msra.mxu0 0.0
        %483 = vmatprep.subr.mxu0 0.0
        %484 = vmatpush1.msra.mxu0 0.0
        %485 = vmatprep.subr.mxu0 0.0
        %486 = vmatpush1.msra.mxu0 0.0
        %487 = vmatprep.mubr.f32.mxu0 0.0
        %488 = vmatmul.mubr.f32.gmra.mrb[0].mxu0 %v417
        %v489 = vpop.f32.mrb[0].mxu0
        %v490 = vadd.f32 %v410, %v489
        %v491 = vpop.f32.mrb[0].mxu0
        %v492 = vadd.f32 %v412, %v491
        %493 = vdwg.mxu0
        %v496 = vcombine.low %v490, %v492
        %498 = vst [vmem:[%s320] sm:$0xff] %v496
        %s499 = sand.u32 %s154, 1
        %s500 = scalar_lea.sflag [#allocation4], %s499
        %s501 = sand.u32 %s154, 1
        %s502 = smul.addr %s501, 8
        %s503 = scalar_lea.vmem [#allocation8], %s502
        // Predicated region
        $region49: #{tpu_custom_call.1} parent=35 // pred_check
          %p504 = pneg %p164
        $region50: #{tpu_custom_call.1} parent=35 // pred_check_branch
          %506 = sbr.rel (%p504) target = $region52
        $region51: #{tpu_custom_call.1} parent=35 // pred_region
          %s507 = smul.u32 2, %s29
          %s509 = ssub.s32 128, 128
          %510 = vsyncadd %s500, %s509
          %s511 = smul.addr %s28, 2
          %s512 = sadd.s32 %s507, %s511
          %s513 = smul.addr %s512, 64
          %s514 = scalar_lea.hbm %s4, %s513
          %s516 = sshll.u32 %s503, 4
          %s517 = int_to_ptr.vmem [resolvable:$true] %s516
          %519 = dma.vmem_to_hbm [thread:$0]  %s517, 128, %s514, %s500
        $region52: #{tpu_custom_call.1} parent=35 // pred_fallthru
          _
      $region36: #{tpu_custom_call.1} parent=5 // pred_fallthru
        _
      %p520 = scmp.le.s32.totalorder 2, %s19
      // Predicated region
      $region53: #{tpu_custom_call.1} parent=5 // pred_check
        %p521 = pneg %p520
      $region54: #{tpu_custom_call.1} parent=5 // pred_check_branch
        %523 = sbr.rel (%p521) target = $region56
      $region55: #{tpu_custom_call.1} parent=5 // pred_region
        %s524 = ssub.s32 %s19, 2
        // Predicated region
        $region57: #{tpu_custom_call.1} parent=55 // pred_check
          %p525 = pneg %p170
        $region58: #{tpu_custom_call.1} parent=55 // pred_check_branch
          %527 = sbr.rel (%p525) target = $region60
        $region59: #{tpu_custom_call.1} parent=55 // pred_region
          %s528 = sand.u32 %s155, 1
          %s529 = scalar_lea.sflag [#allocation4], %s528
          %s530 = sand.u32 %s155, 1
          %s531 = smul.addr %s530, 8
          %s532 = scalar_lea.vmem [#allocation8], %s531
          %533 = dma.done %s529, 128
        $region60: #{tpu_custom_call.1} parent=55 // pred_fallthru
          _
      $region56: #{tpu_custom_call.1} parent=5 // pred_fallthru
        _
    $region6: #{tpu_custom_call.1} parent=1 // loop_footer
      %s23 = sadd.s32 1, %s19
    $region7: #{tpu_custom_call.1} parent=1 // loop_footer_branch
      %18 = sbr.rel target = $region3
    $region8: #{tpu_custom_call.1} parent=1 // loop_exit
      _
    %534 = vsyncpa [#allocation3], 1
    %s535 = scalar_lea.sflag [#allocation3], 1
    %536 = vsyncpa %s535, 1
    %537 = vsyncpa [#allocation6], 1
    %s538 = scalar_lea.sflag [#allocation6], 1
    %539 = vsyncpa %s538, 1
    %540 = vsyncpa [#allocation4], 1
    %s541 = scalar_lea.sflag [#allocation4], 1
    %542 = vsyncpa %s541, 1

</llo_original>
